<compile_context>
chip_gen: v7x
topology: tpu7x:2x2x1
jax: 0.10.0
libtpu: 0.0.40
codegen_flags: <defaults>
</compile_context>

<pallas_src>
import jax
import jax.numpy as jnp
from jax.experimental import pallas as pl
from jax.experimental.pallas import tpu as pltpu

BN_EPS = 1e-3  # matches nn.BatchNorm1d(eps=0.001)


def _round_up(x, m):
    return (x + m - 1) // m * m


def pfe_stream_kernel(x_ref, w_ref, scale_ref, shift_ref, o_ref):
    # x_ref:     (TM, Cin)      one tile of flattened pillar points
    # w_ref:     (Cin, Cout_p)  linear weight (transposed), resident across tiles
    # scale_ref: (1, Cout_p)    gamma * rsqrt(var + eps)
    # shift_ref: (1, Cout_p)    beta - mean * scale
    # o_ref:     (TM, Cout_p)
    y = jnp.dot(x_ref[...], w_ref[...], preferred_element_type=jnp.float32)
    # NOTE: `scale` could be folded into the weight columns in the wrapper to save
    # one VPU multiply per element; kept explicit so the MXU matmul input matches
    # the reference Linear bit-for-bit (kernel is HBM-bound, the extra mul is free).
    o_ref[...] = jnp.maximum(y * scale_ref[...] + shift_ref[...], 0.0).astype(o_ref.dtype)


def pfe_forward(inputs, weight_t, gamma, beta, *, tm=512):
    """PFE forward (use_norm=True).

    inputs:   (N, P, Cin) f32   pillar points
    weight_t: (Cin, Cout) f32   nn.Linear.weight, transposed
    gamma:    (Cout,)           BatchNorm1d.weight
    beta:     (Cout,)           BatchNorm1d.bias
    """
    N, P, Cin = inputs.shape
    Cout = weight_t.shape[1]
    M = N * P
    x2d = inputs.reshape(M, Cin).astype(jnp.float32)
    w = weight_t.astype(jnp.float32)
    hi = jax.lax.Precision.HIGHEST

    # ---- BN batch statistics via the (Cin, Cin) gram matrix (tiny, off hot path).
    s = jnp.sum(x2d, axis=0)                                     # (Cin,)
    g = jnp.dot(x2d.T, x2d, precision=hi)                        # (Cin, Cin)
    mean = jnp.dot(s, w, precision=hi) / M                       # (Cout,)
    ey2 = jnp.sum(w * jnp.dot(g, w, precision=hi), axis=0) / M   # (Cout,) = E[y^2]
    var = ey2 - mean * mean
    scale = gamma.astype(jnp.float32) * jax.lax.rsqrt(var + BN_EPS)
    shift = beta.astype(jnp.float32) - mean * scale

    # ---- pad to TPU-friendly shapes: lane-dense channels, row dim multiple of TM.
    cout_p = _round_up(Cout, 128)
    tm = min(tm, _round_up(M, 8))
    m_p = _round_up(M, tm)
    if cout_p != Cout:
        w = jnp.pad(w, ((0, 0), (0, cout_p - Cout)))
        scale = jnp.pad(scale, (0, cout_p - Cout))
        shift = jnp.pad(shift, (0, cout_p - Cout))
    if m_p != M:
        x2d = jnp.pad(x2d, ((0, m_p - M), (0, 0)))  # zero rows, sliced off below

    grid = (m_p // tm,)
    cost = pl.CostEstimate(
        flops=2 * m_p * Cin * cout_p,
        transcendentals=0,
        bytes_accessed=4 * (m_p * Cin + Cin * cout_p + 2 * cout_p + m_p * cout_p),
    )

    out2d = pl.pallas_call(
        pfe_stream_kernel,
        out_shape=jax.ShapeDtypeStruct((m_p, cout_p), jnp.float32),
        grid_spec=pl.GridSpec(
            grid=grid,
            in_specs=[
                pl.BlockSpec((tm, Cin), lambda i: (i, 0)),       # streamed per tile
                pl.BlockSpec((Cin, cout_p), lambda i: (0, 0)),   # resident
                pl.BlockSpec((1, cout_p), lambda i: (0, 0)),     # resident
                pl.BlockSpec((1, cout_p), lambda i: (0, 0)),     # resident
            ],
            out_specs=pl.BlockSpec((tm, cout_p), lambda i: (i, 0)),
        ),
        compiler_params=pltpu.CompilerParams(
            dimension_semantics=("parallel",),  # independent M-tiles -> megacore on v7x
        ),
        cost_estimate=cost,
    )(x2d, w, scale.reshape(1, cout_p), shift.reshape(1, cout_p))

    return out2d[:M, :Cout].reshape(N, P, Cout)


def pfe_reference(inputs, weight_t, gamma, beta):
    """Plain-JAX reference of the PyTorch forward (training-mode BN)."""
    y = jnp.einsum("npc,cd->npd", inputs, weight_t)
    mean = jnp.mean(y, axis=(0, 1), keepdims=True)
    var = jnp.mean((y - mean) ** 2, axis=(0, 1), keepdims=True)
    y = (y - mean) * jax.lax.rsqrt(var + BN_EPS)
    y = y * gamma.reshape(1, 1, -1) + beta.reshape(1, 1, -1)
    return jnp.maximum(y, 0.0)


if __name__ == "__main__":
    # Small shapes consistent with PointPillars PFE: pillars x points x channels.
    N, P = 40, 32          # num pillars, points per pillar  (M = 1280 rows)
    Cin, Cout = 10, 64     # in_channels, out_channels (Cout=64 exercises lane padding)

    key = jax.random.PRNGKey(0)
    k_x, k_w, k_g, k_b = jax.random.split(key, 4)

    inputs = jax.random.normal(k_x, (N, P, Cin), dtype=jnp.float32)
    # nn.Linear(in, out, bias=False).weight has shape (out, in); store transposed.
    weight_t = (jax.random.normal(k_w, (Cin, Cout), dtype=jnp.float32)
                * (1.0 / jnp.sqrt(Cin)))
    # BatchNorm1d affine params (non-trivial to exercise scale/shift path).
    gamma = 1.0 + 0.1 * jax.random.normal(k_g, (Cout,), dtype=jnp.float32)
    beta = 0.1 * jax.random.normal(k_b, (Cout,), dtype=jnp.float32)

    out = pfe_forward(inputs, weight_t, gamma, beta, tm=512)
    out = jax.block_until_ready(out)

    ref = pfe_reference(inputs, weight_t, gamma, beta)
    assert out.shape == (N, P, Cout)
    assert jnp.allclose(out, ref, atol=2e-4, rtol=2e-4)

    print("KERNEL_OK")
</pallas_src>

<mosaic_0001>
module attributes {stable_mosaic.version = 11 : i64} {
  func.func @pfe_stream_kernel(%arg0: i32, %arg1: memref<512x10xf32, #tpu.memory_space<vmem>>, %arg2: memref<10x128xf32, #tpu.memory_space<vmem>>, %arg3: memref<1x128xf32, #tpu.memory_space<vmem>>, %arg4: memref<1x128xf32, #tpu.memory_space<vmem>>, %arg5: memref<512x128xf32, #tpu.memory_space<vmem>>) attributes {dimension_semantics = [#tpu.dimension_semantics<parallel>], iteration_bounds = array<i64: 3>, scalar_prefetch = 0 : i64, scratch_operands = 0 : i64, tpu.core_type = #tpu.core_type<tc>, window_params = [{transform_indices = @transform_0, window_bounds = array<i64: 512, 10>}, {pipeline_mode = #tpu.pipeline_mode<synchronous>, transform_indices = @transform_1, window_bounds = array<i64: 10, 128>}, {pipeline_mode = #tpu.pipeline_mode<synchronous>, transform_indices = @transform_2, window_bounds = array<i64: 1, 128>}, {pipeline_mode = #tpu.pipeline_mode<synchronous>, transform_indices = @transform_3, window_bounds = array<i64: 1, 128>}, {transform_indices = @transform_4, window_bounds = array<i64: 512, 128>}]} {
    %c0 = arith.constant 0 : index
    %c0_0 = arith.constant 0 : index
    %0 = vector.load %arg1[%c0, %c0_0] : memref<512x10xf32, #tpu.memory_space<vmem>>, vector<512x10xf32>
    %c0_1 = arith.constant 0 : index
    %c0_2 = arith.constant 0 : index
    %1 = vector.load %arg2[%c0_1, %c0_2] : memref<10x128xf32, #tpu.memory_space<vmem>>, vector<10x128xf32>
    %cst = arith.constant dense<0.000000e+00> : vector<512x128xf32>
    %2 = tpu.matmul %0, %1, %cst {dimension_numbers = #tpu.dot_dimension_numbers<[1], [0], [0], [1], [0, 0, 1, 1], [], []>} : vector<512x10xf32>, vector<10x128xf32>, vector<512x128xf32> -> vector<512x128xf32>
    %c0_3 = arith.constant 0 : index
    %c0_4 = arith.constant 0 : index
    %3 = vector.load %arg3[%c0_3, %c0_4] : memref<1x128xf32, #tpu.memory_space<vmem>>, vector<1x128xf32>
    %4 = vector.broadcast %3 : vector<1x128xf32> to vector<512x128xf32>
    %5 = arith.mulf %2, %4 : vector<512x128xf32>
    %c0_5 = arith.constant 0 : index
    %c0_6 = arith.constant 0 : index
    %6 = vector.load %arg4[%c0_5, %c0_6] : memref<1x128xf32, #tpu.memory_space<vmem>>, vector<1x128xf32>
    %7 = vector.broadcast %6 : vector<1x128xf32> to vector<512x128xf32>
    %8 = arith.addf %5, %7 : vector<512x128xf32>
    %cst_7 = arith.constant 0.000000e+00 : f32
    %9 = vector.broadcast %cst_7 : f32 to vector<512x128xf32>
    %10 = arith.maximumf %8, %9 : vector<512x128xf32>
    %c0_8 = arith.constant 0 : index
    %c0_9 = arith.constant 0 : index
    %11 = vector.load %arg5[%c0_8, %c0_9] : memref<512x128xf32, #tpu.memory_space<vmem>>, vector<512x128xf32>
    tpu.vector_store %arg5[%c0_8, %c0_9], %10 {strides = array<i32>} : memref<512x128xf32, #tpu.memory_space<vmem>>, vector<512x128xf32>,
    return
  }
  func.func @transform_0(%arg0: i32) -> (i32, i32) {
    %c0_i32 = arith.constant 0 : i32
    %c0_i32_0 = arith.constant 0 : i32
    return %arg0, %c0_i32 : i32, i32
  }
  func.func @transform_1(%arg0: i32) -> (i32, i32) {
    %c0_i32 = arith.constant 0 : i32
    %c0_i32_0 = arith.constant 0 : i32
    %c0_i32_1 = arith.constant 0 : i32
    return %c0_i32, %c0_i32_0 : i32, i32
  }
  func.func @transform_2(%arg0: i32) -> (i32, i32) {
    %c0_i32 = arith.constant 0 : i32
    %c0_i32_0 = arith.constant 0 : i32
    %c0_i32_1 = arith.constant 0 : i32
    return %c0_i32, %c0_i32_0 : i32, i32
  }
  func.func @transform_3(%arg0: i32) -> (i32, i32) {
    %c0_i32 = arith.constant 0 : i32
    %c0_i32_0 = arith.constant 0 : i32
    %c0_i32_1 = arith.constant 0 : i32
    return %c0_i32, %c0_i32_0 : i32, i32
  }
  func.func @transform_4(%arg0: i32) -> (i32, i32) {
    %c0_i32 = arith.constant 0 : i32
    %c0_i32_0 = arith.constant 0 : i32
    return %arg0, %c0_i32 : i32, i32
  }
}

</mosaic_0001>

<llo_original>
// kernel: tpu_custom_call.1
$region0: #{tpu_custom_call.1}
  #allocation0 [shape = 'u32[]', space=smem, size = 0x4, offset = 0x4, fixed_abs, tag = 'smem constant byte address 0x4 - core index']
  #allocation1 [shape = 'u32[144,128]{1,0:T(1,128)}', space=vmem, size = 0x12000, scoped, tag = 'internal scratch']
  %s0 = inlined_call_operand.vmem [shape: f32[1536,10], index: 0, kind: input, shape index: {}]
  %s1 = inlined_call_operand.vmem [shape: f32[10,128], index: 1, kind: input, shape index: {}]
  %s2 = inlined_call_operand.vmem [shape: f32[1,128], index: 2, kind: input, shape index: {}]
  %s3 = inlined_call_operand.vmem [shape: f32[1,128], index: 3, kind: input, shape index: {}]
  %s4 = inlined_call_operand.hbm [shape: f32[1536,128], index: 4, kind: output, shape index: {}]
  %s5 = sld [smem:[#allocation0]]
  $region49: #{tpu_custom_call.1} parent=0
    _
  %s7 = ssub.s32 1, %s5
  %s8 = scalar_select 0, %s7, %s5
  $region1: #{tpu_custom_call.1} parent=0
    #allocation2 [shape = 'u8[524288]{0}', space=vmem, size = 0x80000, scoped, tag = 'output window, operand 0']
    #allocation3 [shape = 's32[2]{0}', space=sflag, size = 0x8, scoped, tag = 'scoped memory for tpu_custom_call.1']
    %9 = vsyncpa [#allocation3], 0
    %s10 = scalar_lea.sflag [#allocation3], 1
    %11 = vsyncpa %s10, 0
    loop: start=0, step=1, limit=5
    $region2: #{tpu_custom_call.1} parent=1 // loop_pre_header
      _
    $region3: #{tpu_custom_call.1} parent=1 // loop_header
      %s13 = sphi 0, %s17
      %p14 = scmp.ge.s32.totalorder %s13, 5
      %s23 = sphi 0, %s25
      %s26 = sphi 0, %s23
      %s27 = sphi 0, %s26
      %s43 = sphi 0, %s27
      %s47 = sphi 0, %s47
      %s49 = sphi 0, %s47
      %s50 = sphi 0, %s49
      %s64 = sphi 0, %s50
      %s68 = sphi 0, %s68
      %s70 = sphi 0, %s68
      %s71 = sphi 0, %s70
      %s85 = sphi 0, %s71
      %s89 = sphi 0, %s89
      %s91 = sphi 0, %s89
      %s92 = sphi 0, %s91
      %s106 = sphi 0, %s92
      %s112 = sphi 0, %s114
      %s115 = sphi 0, %s112
      %s116 = sphi 0, %s115
      %s132 = sphi 0, %s116
    $region4: #{tpu_custom_call.1} parent=1 // loop_header_branch
      %16 = sbr.rel (%p14) target = $region8
    $region5: #{tpu_custom_call.1} parent=1 // loop_body
      %s18 = ssub.s32 %s13, 1
      %s19 = ssub.s32 %s13, 2
      %s20 = sadd.s32 %s13, 1
      %s21 = ssub.s32 %s13, %s20
      %p22 = scmp.eq.s32.totalorder %s21, 0
      %s24 = sadd.s32 %s23, 1
      %s25 = scalar_select %p22, %s23, %s24
      %p28 = pneg %p22
      %p29 = scmp.eq.s32.totalorder %s13, 2
      %p30 = por %p28, %p29
      %p31 = scmp.ne.s32.totalorder %s23, %s26
      %p32 = scmp.eq.s32.totalorder %s13, 0
      %p33 = por %p31, %p32
      %p34 = scmp.ne.s32.totalorder %s23, %s26
      %p35 = scmp.eq.s32.totalorder %s18, 2
      %p36 = por %p34, %p35
      %p37 = scmp.ne.s32.totalorder %s26, %s27
      %p38 = scmp.eq.s32.totalorder %s18, 0
      %p39 = por %p37, %p38
      %p40 = scmp.ne.s32.totalorder %s26, %s27
      %p41 = scmp.eq.s32.totalorder %s19, 2
      %p42 = por %p40, %p41
      %p44 = scmp.ne.s32.totalorder %s27, %s43
      %p45 = scmp.eq.s32.totalorder %s19, 0
      %p46 = por %p44, %p45
      %s48 = sadd.s32 %s47, 1
      %p51 = scmp.eq.s32.totalorder %s13, 2
      %p52 = scmp.ne.s32.totalorder %s47, %s49
      %p53 = scmp.eq.s32.totalorder %s13, 0
      %p54 = por %p52, %p53
      %p55 = scmp.ne.s32.totalorder %s47, %s49
      %p56 = scmp.eq.s32.totalorder %s18, 2
      %p57 = por %p55, %p56
      %p58 = scmp.ne.s32.totalorder %s49, %s50
      %p59 = scmp.eq.s32.totalorder %s18, 0
      %p60 = por %p58, %p59
      %p61 = scmp.ne.s32.totalorder %s49, %s50
      %p62 = scmp.eq.s32.totalorder %s19, 2
      %p63 = por %p61, %p62
      %p65 = scmp.ne.s32.totalorder %s50, %s64
      %p66 = scmp.eq.s32.totalorder %s19, 0
      %p67 = por %p65, %p66
      %s69 = sadd.s32 %s68, 1
      %p72 = scmp.eq.s32.totalorder %s13, 2
      %p73 = scmp.ne.s32.totalorder %s68, %s70
      %p74 = scmp.eq.s32.totalorder %s13, 0
      %p75 = por %p73, %p74
      %p76 = scmp.ne.s32.totalorder %s68, %s70
      %p77 = scmp.eq.s32.totalorder %s18, 2
      %p78 = por %p76, %p77
      %p79 = scmp.ne.s32.totalorder %s70, %s71
      %p80 = scmp.eq.s32.totalorder %s18, 0
      %p81 = por %p79, %p80
      %p82 = scmp.ne.s32.totalorder %s70, %s71
      %p83 = scmp.eq.s32.totalorder %s19, 2
      %p84 = por %p82, %p83
      %p86 = scmp.ne.s32.totalorder %s71, %s85
      %p87 = scmp.eq.s32.totalorder %s19, 0
      %p88 = por %p86, %p87
      %s90 = sadd.s32 %s89, 1
      %p93 = scmp.eq.s32.totalorder %s13, 2
      %p94 = scmp.ne.s32.totalorder %s89, %s91
      %p95 = scmp.eq.s32.totalorder %s13, 0
      %p96 = por %p94, %p95
      %p97 = scmp.ne.s32.totalorder %s89, %s91
      %p98 = scmp.eq.s32.totalorder %s18, 2
      %p99 = por %p97, %p98
      %p100 = scmp.ne.s32.totalorder %s91, %s92
      %p101 = scmp.eq.s32.totalorder %s18, 0
      %p102 = por %p100, %p101
      %p103 = scmp.ne.s32.totalorder %s91, %s92
      %p104 = scmp.eq.s32.totalorder %s19, 2
      %p105 = por %p103, %p104
      %p107 = scmp.ne.s32.totalorder %s92, %s106
      %p108 = scmp.eq.s32.totalorder %s19, 0
      %p109 = por %p107, %p108
      %s110 = ssub.s32 %s13, %s20
      %p111 = scmp.eq.s32.totalorder %s110, 0
      %s113 = sadd.s32 %s112, 1
      %s114 = scalar_select %p111, %s112, %s113
      %p117 = pneg %p111
      %p118 = scmp.eq.s32.totalorder %s13, 2
      %p119 = por %p117, %p118
      %p120 = scmp.ne.s32.totalorder %s112, %s115
      %p121 = scmp.eq.s32.totalorder %s13, 0
      %p122 = por %p120, %p121
      %p123 = scmp.ne.s32.totalorder %s112, %s115
      %p124 = scmp.eq.s32.totalorder %s18, 2
      %p125 = por %p123, %p124
      %p126 = scmp.ne.s32.totalorder %s115, %s116
      %p127 = scmp.eq.s32.totalorder %s18, 0
      %p128 = por %p126, %p127
      %p129 = scmp.ne.s32.totalorder %s115, %s116
      %p130 = scmp.eq.s32.totalorder %s19, 2
      %p131 = por %p129, %p130
      %p133 = scmp.ne.s32.totalorder %s116, %s132
      %p134 = scmp.eq.s32.totalorder %s19, 0
      %p135 = por %p133, %p134
      %p136 = scmp.le.s32.totalorder 1, %s13
      %p137 = scmp.lt.s32.totalorder %s13, 4
      %p138 = pnand %p136, %p137
      %p139 = pneg %p138
      // Predicated region
      $region9: #{tpu_custom_call.1} parent=5 // pred_check
        _
      $region10: #{tpu_custom_call.1} parent=5 // pred_check_branch
        %141 = sbr.rel (%p138) target = $region12
      $region11: #{tpu_custom_call.1} parent=5 // pred_region
        %s142 = ssub.s32 %s13, 1
        // Predicated region
        $region13: #{tpu_custom_call.1} parent=11 // pred_check
          %p143 = pneg %p60
        $region14: #{tpu_custom_call.1} parent=11 // pred_check_branch
          %145 = sbr.rel (%p143) target = $region16
        $region15: #{tpu_custom_call.1} parent=11 // pred_region
          _
        $region16: #{tpu_custom_call.1} parent=11 // pred_fallthru
          _
        // Predicated region
        $region17: #{tpu_custom_call.1} parent=11 // pred_check
          %p146 = pneg %p81
        $region18: #{tpu_custom_call.1} parent=11 // pred_check_branch
          %148 = sbr.rel (%p146) target = $region20
        $region19: #{tpu_custom_call.1} parent=11 // pred_region
          _
        $region20: #{tpu_custom_call.1} parent=11 // pred_fallthru
          _
        // Predicated region
        $region21: #{tpu_custom_call.1} parent=11 // pred_check
          %p149 = pneg %p102
        $region22: #{tpu_custom_call.1} parent=11 // pred_check_branch
          %151 = sbr.rel (%p149) target = $region24
        $region23: #{tpu_custom_call.1} parent=11 // pred_region
          _
        $region24: #{tpu_custom_call.1} parent=11 // pred_fallthru
          _
      $region12: #{tpu_custom_call.1} parent=5 // pred_fallthru
        _
      %p152 = scmp.lt.s32.totalorder %s13, 3
      // Predicated region
      $region25: #{tpu_custom_call.1} parent=5 // pred_check
        %p153 = pneg %p152
      $region26: #{tpu_custom_call.1} parent=5 // pred_check_branch
        %155 = sbr.rel (%p153) target = $region28
      $region27: #{tpu_custom_call.1} parent=5 // pred_region
        // Predicated region
        $region29: #{tpu_custom_call.1} parent=27 // pred_check
          %p156 = pneg %p33
        $region30: #{tpu_custom_call.1} parent=27 // pred_check_branch
          %158 = sbr.rel (%p156) target = $region32
        $region31: #{tpu_custom_call.1} parent=27 // pred_region
          %s159 = smul.u32 64, %s13
          %p160 = scmp.lt.s32.totalorder %s159, 191
          %s161 = scalar_select %p160, %s159, 191
          %s162 = smul.addr %s161, 8
          %s163 = scalar_lea.vmem %s0, %s162
          %s164 = smul.u32 64, %s13
        $region32: #{tpu_custom_call.1} parent=27 // pred_fallthru
          _
      $region28: #{tpu_custom_call.1} parent=5 // pred_fallthru
        _
      %p165 = scmp.le.s32.totalorder 1, %s13
      %p166 = scmp.lt.s32.totalorder %s13, 4
      %p167 = pnand %p165, %p166
      %p168 = pneg %p167
      // Predicated region
      $region33: #{tpu_custom_call.1} parent=5 // pred_check
        _
      $region34: #{tpu_custom_call.1} parent=5 // pred_check_branch
        %170 = sbr.rel (%p167) target = $region36
      $region35: #{tpu_custom_call.1} parent=5 // pred_region
        %s171 = ssub.s32 %s13, 1
        %s172 = smul.u32 64, %s18
        %p173 = scmp.lt.s32.totalorder %s172, 191
        %s174 = scalar_select %p173, %s172, 191
        %s175 = smul.addr %s174, 8
        %s176 = scalar_lea.vmem %s0, %s175
        %p177 = pneg %p39
        %p178 = pneg %p36
        %p179 = pneg %p60
        %p180 = pneg %p57
        %p181 = pneg %p81
        %p182 = pneg %p78
        %p183 = pneg %p102
        %p184 = pneg %p99
        %p185 = pneg %p128
        %p186 = pneg %p125
        %s187 = sand.u32 %s115, 1
        %s188 = scalar_lea.sflag [#allocation3], %s187
        %s189 = sand.u32 %s115, 1
        %s190 = smul.addr %s189, 512
        %s191 = scalar_lea.vmem [#allocation2], %s190
        %s192 = smul.u32 64, %s18
        %p193 = scmp.lt.s32.totalorder %s192, 191
        %s194 = scalar_select %p193, %s192, 191
        %s195 = smul.addr %s194, 8
        %s196 = scalar_lea.vmem %s0, %s195
        %s197 = smul.u32 64, %s18
        %s198 = smul.u32 64, %s18
        %v199 = vld [vmem:[%s196] sm:$0xff]
        %v200 = vld [vmem:[%s196 + $0x8] sm:$0xff]
        %v201 = vld [vmem:[%s196 + $0x10] sm:$0xff]
        %v202 = vld [vmem:[%s196 + $0x18] sm:$0xff]
        %v203 = vld [vmem:[%s196 + $0x20] sm:$0xff]
        %v204 = vld [vmem:[%s196 + $0x28] sm:$0xff]
        %v205 = vld [vmem:[%s196 + $0x30] sm:$0xff]
        %v206 = vld [vmem:[%s196 + $0x38] sm:$0xff]
        %v207 = vld [vmem:[%s196 + $0x40] sm:$0xff]
        %v208 = vld [vmem:[%s196 + $0x48] sm:$0xff]
        %v209 = vld [vmem:[%s196 + $0x50] sm:$0xff]
        %v210 = vld [vmem:[%s196 + $0x58] sm:$0xff]
        %v211 = vld [vmem:[%s196 + $0x60] sm:$0xff]
        %v212 = vld [vmem:[%s196 + $0x68] sm:$0xff]
        %v213 = vld [vmem:[%s196 + $0x70] sm:$0xff]
        %v214 = vld [vmem:[%s196 + $0x78] sm:$0xff]
        %v215 = vld [vmem:[%s196 + $0x80] sm:$0xff]
        %v216 = vld [vmem:[%s196 + $0x88] sm:$0xff]
        %v217 = vld [vmem:[%s196 + $0x90] sm:$0xff]
        %v218 = vld [vmem:[%s196 + $0x98] sm:$0xff]
        %v219 = vld [vmem:[%s196 + $0xa0] sm:$0xff]
        %v220 = vld [vmem:[%s196 + $0xa8] sm:$0xff]
        %v221 = vld [vmem:[%s196 + $0xb0] sm:$0xff]
        %v222 = vld [vmem:[%s196 + $0xb8] sm:$0xff]
        %v223 = vld [vmem:[%s196 + $0xc0] sm:$0xff]
        %v224 = vld [vmem:[%s196 + $0xc8] sm:$0xff]
        %v225 = vld [vmem:[%s196 + $0xd0] sm:$0xff]
        %v226 = vld [vmem:[%s196 + $0xd8] sm:$0xff]
        %v227 = vld [vmem:[%s196 + $0xe0] sm:$0xff]
        %v228 = vld [vmem:[%s196 + $0xe8] sm:$0xff]
        %v229 = vld [vmem:[%s196 + $0xf0] sm:$0xff]
        %v230 = vld [vmem:[%s196 + $0xf8] sm:$0xff]
        %v231 = vld [vmem:[%s196 + $0x100] sm:$0xff]
        %v232 = vld [vmem:[%s196 + $0x108] sm:$0xff]
        %v233 = vld [vmem:[%s196 + $0x110] sm:$0xff]
        %v234 = vld [vmem:[%s196 + $0x118] sm:$0xff]
        %v235 = vld [vmem:[%s196 + $0x120] sm:$0xff]
        %v236 = vld [vmem:[%s196 + $0x128] sm:$0xff]
        %v237 = vld [vmem:[%s196 + $0x130] sm:$0xff]
        %v238 = vld [vmem:[%s196 + $0x138] sm:$0xff]
        %v239 = vld [vmem:[%s196 + $0x140] sm:$0xff]
        %v240 = vld [vmem:[%s196 + $0x148] sm:$0xff]
        %v241 = vld [vmem:[%s196 + $0x150] sm:$0xff]
        %v242 = vld [vmem:[%s196 + $0x158] sm:$0xff]
        %v243 = vld [vmem:[%s196 + $0x160] sm:$0xff]
        %v244 = vld [vmem:[%s196 + $0x168] sm:$0xff]
        %v245 = vld [vmem:[%s196 + $0x170] sm:$0xff]
        %v246 = vld [vmem:[%s196 + $0x178] sm:$0xff]
        %v247 = vld [vmem:[%s196 + $0x180] sm:$0xff]
        %v248 = vld [vmem:[%s196 + $0x188] sm:$0xff]
        %v249 = vld [vmem:[%s196 + $0x190] sm:$0xff]
        %v250 = vld [vmem:[%s196 + $0x198] sm:$0xff]
        %v251 = vld [vmem:[%s196 + $0x1a0] sm:$0xff]
        %v252 = vld [vmem:[%s196 + $0x1a8] sm:$0xff]
        %v253 = vld [vmem:[%s196 + $0x1b0] sm:$0xff]
        %v254 = vld [vmem:[%s196 + $0x1b8] sm:$0xff]
        %v255 = vld [vmem:[%s196 + $0x1c0] sm:$0xff]
        %v256 = vld [vmem:[%s196 + $0x1c8] sm:$0xff]
        %v257 = vld [vmem:[%s196 + $0x1d0] sm:$0xff]
        %v258 = vld [vmem:[%s196 + $0x1d8] sm:$0xff]
        %v259 = vld [vmem:[%s196 + $0x1e0] sm:$0xff]
        %v260 = vld [vmem:[%s196 + $0x1e8] sm:$0xff]
        %v261 = vld [vmem:[%s196 + $0x1f0] sm:$0xff]
        %v262 = vld [vmem:[%s196 + $0x1f8] sm:$0xff]
        %v263 = vld [vmem:[%s1] sm:$0xff]
        %v264 = vld [vmem:[%s1 + $0x8] sm:$0x3]
        %vm265 = vcmask 80896
        %v267 = vsel %vm265, %v199, 0
        %v270 = vsel %vm265, %v200, 0
        %v273 = vsel %vm265, %v201, 0
        %v276 = vsel %vm265, %v202, 0
        %v279 = vsel %vm265, %v203, 0
        %v282 = vsel %vm265, %v204, 0
        %v285 = vsel %vm265, %v205, 0
        %v288 = vsel %vm265, %v206, 0
        %v291 = vsel %vm265, %v207, 0
        %v294 = vsel %vm265, %v208, 0
        %v297 = vsel %vm265, %v209, 0
        %v300 = vsel %vm265, %v210, 0
        %v303 = vsel %vm265, %v211, 0
        %v306 = vsel %vm265, %v212, 0
        %v309 = vsel %vm265, %v213, 0
        %v312 = vsel %vm265, %v214, 0
        %v315 = vsel %vm265, %v215, 0
        %v318 = vsel %vm265, %v216, 0
        %v321 = vsel %vm265, %v217, 0
        %v324 = vsel %vm265, %v218, 0
        %v327 = vsel %vm265, %v219, 0
        %v330 = vsel %vm265, %v220, 0
        %v333 = vsel %vm265, %v221, 0
        %v336 = vsel %vm265, %v222, 0
        %v339 = vsel %vm265, %v223, 0
        %v342 = vsel %vm265, %v224, 0
        %v345 = vsel %vm265, %v225, 0
        %v348 = vsel %vm265, %v226, 0
        %v351 = vsel %vm265, %v227, 0
        %v354 = vsel %vm265, %v228, 0
        %v357 = vsel %vm265, %v229, 0
        %v360 = vsel %vm265, %v230, 0
        %v363 = vsel %vm265, %v231, 0
        %v366 = vsel %vm265, %v232, 0
        %v369 = vsel %vm265, %v233, 0
        %v372 = vsel %vm265, %v234, 0
        %v375 = vsel %vm265, %v235, 0
        %v378 = vsel %vm265, %v236, 0
        %v381 = vsel %vm265, %v237, 0
        %v384 = vsel %vm265, %v238, 0
        %v387 = vsel %vm265, %v239, 0
        %v390 = vsel %vm265, %v240, 0
        %v393 = vsel %vm265, %v241, 0
        %v396 = vsel %vm265, %v242, 0
        %v399 = vsel %vm265, %v243, 0
        %v402 = vsel %vm265, %v244, 0
        %v405 = vsel %vm265, %v245, 0
        %v408 = vsel %vm265, %v246, 0
        %v411 = vsel %vm265, %v247, 0
        %v414 = vsel %vm265, %v248, 0
        %v417 = vsel %vm265, %v249, 0
        %v420 = vsel %vm265, %v250, 0
        %v423 = vsel %vm265, %v251, 0
        %v426 = vsel %vm265, %v252, 0
        %v429 = vsel %vm265, %v253, 0
        %v432 = vsel %vm265, %v254, 0
        %v435 = vsel %vm265, %v255, 0
        %v438 = vsel %vm265, %v256, 0
        %v441 = vsel %vm265, %v257, 0
        %v444 = vsel %vm265, %v258, 0
        %v447 = vsel %vm265, %v259, 0
        %v450 = vsel %vm265, %v260, 0
        %v453 = vsel %vm265, %v261, 0
        %v456 = vsel %vm265, %v262, 0
        %vm458 = vcmask 1041408
        %v460 = vsel %vm458, %v264, 0
        %462 = vmatprep.subr.mxu0 0.0
        %463 = vmatpush1.msra.mxu0 %v263
        %464 = vmatprep.subr.mxu0 0.0
        %465 = vmatpush1.msra.mxu0 %v460
        %466 = vmatprep.subr.mxu0 0.0
        %467 = vmatpush1.msra.mxu0 0.0
        %468 = vmatprep.subr.mxu0 0.0
        %469 = vmatpush1.msra.mxu0 0.0
        %470 = vmatprep.subr.mxu0 0.0
        %471 = vmatpush1.msra.mxu0 0.0
        %472 = vmatprep.subr.mxu0 0.0
        %473 = vmatpush1.msra.mxu0 0.0
        %474 = vmatprep.subr.mxu0 0.0
        %475 = vmatpush1.msra.mxu0 0.0
        %476 = vmatprep.subr.mxu0 0.0
        %477 = vmatpush1.msra.mxu0 0.0
        %478 = vmatprep.subr.mxu0 0.0
        %479 = vmatpush1.msra.mxu0 0.0
        %480 = vmatprep.subr.mxu0 0.0
        %481 = vmatpush1.msra.mxu0 0.0
        %482 = vmatprep.subr.mxu0 0.0
        %483 = vmatpush1.msra.mxu0 0.0
        %484 = vmatprep.subr.mxu0 0.0
        %485 = vmatpush1.msra.mxu0 0.0
        %486 = vmatprep.subr.mxu0 0.0
        %487 = vmatpush1.msra.mxu0 0.0
        %488 = vmatprep.subr.mxu0 0.0
        %489 = vmatpush1.msra.mxu0 0.0
        %490 = vmatprep.subr.mxu0 0.0
        %491 = vmatpush1.msra.mxu0 0.0
        %492 = vmatprep.subr.mxu0 0.0
        %493 = vmatpush1.msra.mxu0 0.0
        %494 = vmatprep.subr.mxu0 0.0
        %495 = vmatpush1.msra.mxu0 0.0
        %496 = vmatprep.subr.mxu0 0.0
        %497 = vmatpush1.msra.mxu0 0.0
        %498 = vmatprep.subr.mxu0 0.0
        %499 = vmatpush1.msra.mxu0 0.0
        %500 = vmatprep.subr.mxu0 0.0
        %501 = vmatpush1.msra.mxu0 0.0
        %502 = vmatprep.subr.mxu0 0.0
        %503 = vmatpush1.msra.mxu0 0.0
        %504 = vmatprep.subr.mxu0 0.0
        %505 = vmatpush1.msra.mxu0 0.0
        %506 = vmatprep.subr.mxu0 0.0
        %507 = vmatpush1.msra.mxu0 0.0
        %508 = vmatprep.subr.mxu0 0.0
        %509 = vmatpush1.msra.mxu0 0.0
        %510 = vmatprep.subr.mxu0 0.0
        %511 = vmatpush1.msra.mxu0 0.0
        %512 = vmatprep.subr.mxu0 0.0
        %513 = vmatpush1.msra.mxu0 0.0
        %514 = vmatprep.subr.mxu0 0.0
        %515 = vmatpush1.msra.mxu0 0.0
        %516 = vmatprep.subr.mxu0 0.0
        %517 = vmatpush1.msra.mxu0 0.0
        %518 = vmatprep.subr.mxu0 0.0
        %519 = vmatpush1.msra.mxu0 0.0
        %520 = vmatprep.subr.mxu0 0.0
        %521 = vmatpush1.msra.mxu0 0.0
        %522 = vmatprep.subr.mxu0 0.0
        %523 = vmatpush1.msra.mxu0 0.0
        %524 = vmatprep.subr.mxu0 0.0
        %525 = vmatpush1.msra.mxu0 0.0
        %526 = vmatprep.mubr.f32.mxu0 0.0
        %527 = vmatmul.mubr.f32.gmra.mrb[0].mxu0 %v267
        %v528 = vpop.f32.mrb[0].mxu0
        %v529 = vadd.f32 0.0, %v528
        %v530 = vpop.f32.mrb[0].mxu0
        %531 = vmatprep.mubr.f32.mxu0 0.0
        %532 = vmatmul.mubr.f32.gmra.mrb[0].mxu0 %v270
        %v533 = vpop.f32.mrb[0].mxu0
        %v534 = vadd.f32 0.0, %v533
        %v535 = vpop.f32.mrb[0].mxu0
        %536 = vmatprep.mubr.f32.mxu0 0.0
        %537 = vmatmul.mubr.f32.gmra.mrb[0].mxu0 %v273
        %v538 = vpop.f32.mrb[0].mxu0
        %v539 = vadd.f32 0.0, %v538
        %v540 = vpop.f32.mrb[0].mxu0
        %541 = vmatprep.mubr.f32.mxu0 0.0
        %542 = vmatmul.mubr.f32.gmra.mrb[0].mxu0 %v276
        %v543 = vpop.f32.mrb[0].mxu0
        %v544 = vadd.f32 0.0, %v543
        %v545 = vpop.f32.mrb[0].mxu0
        %546 = vmatprep.mubr.f32.mxu0 0.0
        %547 = vmatmul.mubr.f32.gmra.mrb[0].mxu0 %v279
        %v548 = vpop.f32.mrb[0].mxu0
        %v549 = vadd.f32 0.0, %v548
        %v550 = vpop.f32.mrb[0].mxu0
        %551 = vmatprep.mubr.f32.mxu0 0.0
        %552 = vmatmul.mubr.f32.gmra.mrb[0].mxu0 %v282
        %v553 = vpop.f32.mrb[0].mxu0
        %v554 = vadd.f32 0.0, %v553
        %v555 = vpop.f32.mrb[0].mxu0
        %556 = vmatprep.mubr.f32.mxu0 0.0
        %557 = vmatmul.mubr.f32.gmra.mrb[0].mxu0 %v285
        %v558 = vpop.f32.mrb[0].mxu0
        %v559 = vadd.f32 0.0, %v558
        %v560 = vpop.f32.mrb[0].mxu0
        %561 = vmatprep.mubr.f32.mxu0 0.0
        %562 = vmatmul.mubr.f32.gmra.mrb[0].mxu0 %v288
        %v563 = vpop.f32.mrb[0].mxu0
        %v564 = vadd.f32 0.0, %v563
        %v565 = vpop.f32.mrb[0].mxu0
        %566 = vmatprep.mubr.f32.mxu0 0.0
        %567 = vmatmul.mubr.f32.gmra.mrb[0].mxu0 %v291
        %v568 = vpop.f32.mrb[0].mxu0
        %v569 = vadd.f32 0.0, %v568
        %v570 = vpop.f32.mrb[0].mxu0
        %571 = vmatprep.mubr.f32.mxu0 0.0
        %572 = vmatmul.mubr.f32.gmra.mrb[0].mxu0 %v294
        %v573 = vpop.f32.mrb[0].mxu0
        %v574 = vadd.f32 0.0, %v573
        %v575 = vpop.f32.mrb[0].mxu0
        %576 = vmatprep.mubr.f32.mxu0 0.0
        %577 = vmatmul.mubr.f32.gmra.mrb[0].mxu0 %v297
        %v578 = vpop.f32.mrb[0].mxu0
        %v579 = vadd.f32 0.0, %v578
        %v580 = vpop.f32.mrb[0].mxu0
        %581 = vmatprep.mubr.f32.mxu0 0.0
        %582 = vmatmul.mubr.f32.gmra.mrb[0].mxu0 %v300
        %v583 = vpop.f32.mrb[0].mxu0
        %v584 = vadd.f32 0.0, %v583
        %v585 = vpop.f32.mrb[0].mxu0
        %586 = vmatprep.mubr.f32.mxu0 0.0
        %587 = vmatmul.mubr.f32.gmra.mrb[0].mxu0 %v303
        %v588 = vpop.f32.mrb[0].mxu0
        %v589 = vadd.f32 0.0, %v588
        %v590 = vpop.f32.mrb[0].mxu0
        %591 = vmatprep.mubr.f32.mxu0 0.0
        %592 = vmatmul.mubr.f32.gmra.mrb[0].mxu0 %v306
        %v593 = vpop.f32.mrb[0].mxu0
        %v594 = vadd.f32 0.0, %v593
        %v595 = vpop.f32.mrb[0].mxu0
        %596 = vmatprep.mubr.f32.mxu0 0.0
        %597 = vmatmul.mubr.f32.gmra.mrb[0].mxu0 %v309
        %v598 = vpop.f32.mrb[0].mxu0
        %v599 = vadd.f32 0.0, %v598
        %v600 = vpop.f32.mrb[0].mxu0
        %601 = vmatprep.mubr.f32.mxu0 0.0
        %602 = vmatmul.mubr.f32.gmra.mrb[0].mxu0 %v312
        %v603 = vpop.f32.mrb[0].mxu0
        %v604 = vadd.f32 0.0, %v603
        %v605 = vpop.f32.mrb[0].mxu0
        %606 = vmatprep.mubr.f32.mxu0 0.0
        %607 = vmatmul.mubr.f32.gmra.mrb[0].mxu0 %v315
        %v608 = vpop.f32.mrb[0].mxu0
        %v609 = vadd.f32 0.0, %v608
        %v610 = vpop.f32.mrb[0].mxu0
        %611 = vmatprep.mubr.f32.mxu0 0.0
        %612 = vmatmul.mubr.f32.gmra.mrb[0].mxu0 %v318
        %v613 = vpop.f32.mrb[0].mxu0
        %v614 = vadd.f32 0.0, %v613
        %v615 = vpop.f32.mrb[0].mxu0
        %616 = vmatprep.mubr.f32.mxu0 0.0
        %617 = vmatmul.mubr.f32.gmra.mrb[0].mxu0 %v321
        %v618 = vpop.f32.mrb[0].mxu0
        %v619 = vadd.f32 0.0, %v618
        %v620 = vpop.f32.mrb[0].mxu0
        %621 = vmatprep.mubr.f32.mxu0 0.0
        %622 = vmatmul.mubr.f32.gmra.mrb[0].mxu0 %v324
        %v623 = vpop.f32.mrb[0].mxu0
        %v624 = vadd.f32 0.0, %v623
        %v625 = vpop.f32.mrb[0].mxu0
        %626 = vmatprep.mubr.f32.mxu0 0.0
        %627 = vmatmul.mubr.f32.gmra.mrb[0].mxu0 %v327
        %v628 = vpop.f32.mrb[0].mxu0
        %v629 = vadd.f32 0.0, %v628
        %v630 = vpop.f32.mrb[0].mxu0
        %631 = vmatprep.mubr.f32.mxu0 0.0
        %632 = vmatmul.mubr.f32.gmra.mrb[0].mxu0 %v330
        %v633 = vpop.f32.mrb[0].mxu0
        %v634 = vadd.f32 0.0, %v633
        %v635 = vpop.f32.mrb[0].mxu0
        %636 = vmatprep.mubr.f32.mxu0 0.0
        %637 = vmatmul.mubr.f32.gmra.mrb[0].mxu0 %v333
        %v638 = vpop.f32.mrb[0].mxu0
        %v639 = vadd.f32 0.0, %v638
        %v640 = vpop.f32.mrb[0].mxu0
        %641 = vmatprep.mubr.f32.mxu0 0.0
        %642 = vmatmul.mubr.f32.gmra.mrb[0].mxu0 %v336
        %v643 = vpop.f32.mrb[0].mxu0
        %v644 = vadd.f32 0.0, %v643
        %v645 = vpop.f32.mrb[0].mxu0
        %646 = vmatprep.mubr.f32.mxu0 0.0
        %647 = vmatmul.mubr.f32.gmra.mrb[0].mxu0 %v339
        %v648 = vpop.f32.mrb[0].mxu0
        %v649 = vadd.f32 0.0, %v648
        %v650 = vpop.f32.mrb[0].mxu0
        %651 = vmatprep.mubr.f32.mxu0 0.0
        %652 = vmatmul.mubr.f32.gmra.mrb[0].mxu0 %v342
        %v653 = vpop.f32.mrb[0].mxu0
        %v654 = vadd.f32 0.0, %v653
        %v655 = vpop.f32.mrb[0].mxu0
        %656 = vmatprep.mubr.f32.mxu0 0.0
        %657 = vmatmul.mubr.f32.gmra.mrb[0].mxu0 %v345
        %v658 = vpop.f32.mrb[0].mxu0
        %v659 = vadd.f32 0.0, %v658
        %v660 = vpop.f32.mrb[0].mxu0
        %661 = vmatprep.mubr.f32.mxu0 0.0
        %662 = vmatmul.mubr.f32.gmra.mrb[0].mxu0 %v348
        %v663 = vpop.f32.mrb[0].mxu0
        %v664 = vadd.f32 0.0, %v663
        %v665 = vpop.f32.mrb[0].mxu0
        %666 = vmatprep.mubr.f32.mxu0 0.0
        %667 = vmatmul.mubr.f32.gmra.mrb[0].mxu0 %v351
        %v668 = vpop.f32.mrb[0].mxu0
        %v669 = vadd.f32 0.0, %v668
        %v670 = vpop.f32.mrb[0].mxu0
        %671 = vmatprep.mubr.f32.mxu0 0.0
        %672 = vmatmul.mubr.f32.gmra.mrb[0].mxu0 %v354
        %v673 = vpop.f32.mrb[0].mxu0
        %v674 = vadd.f32 0.0, %v673
        %v675 = vpop.f32.mrb[0].mxu0
        %676 = vmatprep.mubr.f32.mxu0 0.0
        %677 = vmatmul.mubr.f32.gmra.mrb[0].mxu0 %v357
        %v678 = vpop.f32.mrb[0].mxu0
        %v679 = vadd.f32 0.0, %v678
        %v680 = vpop.f32.mrb[0].mxu0
        %681 = vmatprep.mubr.f32.mxu0 0.0
        %682 = vmatmul.mubr.f32.gmra.mrb[0].mxu0 %v360
        %v683 = vpop.f32.mrb[0].mxu0
        %v684 = vadd.f32 0.0, %v683
        %v685 = vpop.f32.mrb[0].mxu0
        %686 = vmatprep.mubr.f32.mxu0 0.0
        %687 = vmatmul.mubr.f32.gmra.mrb[0].mxu0 %v363
        %v688 = vpop.f32.mrb[0].mxu0
        %v689 = vadd.f32 0.0, %v688
        %v690 = vpop.f32.mrb[0].mxu0
        %691 = vmatprep.mubr.f32.mxu0 0.0
        %692 = vmatmul.mubr.f32.gmra.mrb[0].mxu0 %v366
        %v693 = vpop.f32.mrb[0].mxu0
        %v694 = vadd.f32 0.0, %v693
        %v695 = vpop.f32.mrb[0].mxu0
        %696 = vmatprep.mubr.f32.mxu0 0.0
        %697 = vmatmul.mubr.f32.gmra.mrb[0].mxu0 %v369
        %v698 = vpop.f32.mrb[0].mxu0
        %v699 = vadd.f32 0.0, %v698
        %v700 = vpop.f32.mrb[0].mxu0
        %701 = vmatprep.mubr.f32.mxu0 0.0
        %702 = vmatmul.mubr.f32.gmra.mrb[0].mxu0 %v372
        %v703 = vpop.f32.mrb[0].mxu0
        %v704 = vadd.f32 0.0, %v703
        %v705 = vpop.f32.mrb[0].mxu0
        %706 = vmatprep.mubr.f32.mxu0 0.0
        %707 = vmatmul.mubr.f32.gmra.mrb[0].mxu0 %v375
        %v708 = vpop.f32.mrb[0].mxu0
        %v709 = vadd.f32 0.0, %v708
        %v710 = vpop.f32.mrb[0].mxu0
        %711 = vmatprep.mubr.f32.mxu0 0.0
        %712 = vmatmul.mubr.f32.gmra.mrb[0].mxu0 %v378
        %v713 = vpop.f32.mrb[0].mxu0
        %v714 = vadd.f32 0.0, %v713
        %v715 = vpop.f32.mrb[0].mxu0
        %716 = vmatprep.mubr.f32.mxu0 0.0
        %717 = vmatmul.mubr.f32.gmra.mrb[0].mxu0 %v381
        %v718 = vpop.f32.mrb[0].mxu0
        %v719 = vadd.f32 0.0, %v718
        %v720 = vpop.f32.mrb[0].mxu0
        %721 = vmatprep.mubr.f32.mxu0 0.0
        %722 = vmatmul.mubr.f32.gmra.mrb[0].mxu0 %v384
        %v723 = vpop.f32.mrb[0].mxu0
        %v724 = vadd.f32 0.0, %v723
        %v725 = vpop.f32.mrb[0].mxu0
        %726 = vmatprep.mubr.f32.mxu0 0.0
        %727 = vmatmul.mubr.f32.gmra.mrb[0].mxu0 %v387
        %v728 = vpop.f32.mrb[0].mxu0
        %v729 = vadd.f32 0.0, %v728
        %v730 = vpop.f32.mrb[0].mxu0
        %731 = vmatprep.mubr.f32.mxu0 0.0
        %732 = vmatmul.mubr.f32.gmra.mrb[0].mxu0 %v390
        %v733 = vpop.f32.mrb[0].mxu0
        %v734 = vadd.f32 0.0, %v733
        %v735 = vpop.f32.mrb[0].mxu0
        %736 = vmatprep.mubr.f32.mxu0 0.0
        %737 = vmatmul.mubr.f32.gmra.mrb[0].mxu0 %v393
        %v738 = vpop.f32.mrb[0].mxu0
        %v739 = vadd.f32 0.0, %v738
        %v740 = vpop.f32.mrb[0].mxu0
        %741 = vmatprep.mubr.f32.mxu0 0.0
        %742 = vmatmul.mubr.f32.gmra.mrb[0].mxu0 %v396
        %v743 = vpop.f32.mrb[0].mxu0
        %v744 = vadd.f32 0.0, %v743
        %v745 = vpop.f32.mrb[0].mxu0
        %746 = vmatprep.mubr.f32.mxu0 0.0
        %747 = vmatmul.mubr.f32.gmra.mrb[0].mxu0 %v399
        %v748 = vpop.f32.mrb[0].mxu0
        %v749 = vadd.f32 0.0, %v748
        %v750 = vpop.f32.mrb[0].mxu0
        %751 = vmatprep.mubr.f32.mxu0 0.0
        %752 = vmatmul.mubr.f32.gmra.mrb[0].mxu0 %v402
        %v753 = vpop.f32.mrb[0].mxu0
        %v754 = vadd.f32 0.0, %v753
        %v755 = vpop.f32.mrb[0].mxu0
        %756 = vmatprep.mubr.f32.mxu0 0.0
        %757 = vmatmul.mubr.f32.gmra.mrb[0].mxu0 %v405
        %v758 = vpop.f32.mrb[0].mxu0
        %v759 = vadd.f32 0.0, %v758
        %v760 = vpop.f32.mrb[0].mxu0
        %761 = vmatprep.mubr.f32.mxu0 0.0
        %762 = vmatmul.mubr.f32.gmra.mrb[0].mxu0 %v408
        %v763 = vpop.f32.mrb[0].mxu0
        %v764 = vadd.f32 0.0, %v763
        %v765 = vpop.f32.mrb[0].mxu0
        %766 = vmatprep.mubr.f32.mxu0 0.0
        %767 = vmatmul.mubr.f32.gmra.mrb[0].mxu0 %v411
        %v768 = vpop.f32.mrb[0].mxu0
        %v769 = vadd.f32 0.0, %v768
        %v770 = vpop.f32.mrb[0].mxu0
        %771 = vmatprep.mubr.f32.mxu0 0.0
        %772 = vmatmul.mubr.f32.gmra.mrb[0].mxu0 %v414
        %v773 = vpop.f32.mrb[0].mxu0
        %v774 = vadd.f32 0.0, %v773
        %v775 = vpop.f32.mrb[0].mxu0
        %776 = vmatprep.mubr.f32.mxu0 0.0
        %777 = vmatmul.mubr.f32.gmra.mrb[0].mxu0 %v417
        %v778 = vpop.f32.mrb[0].mxu0
        %v779 = vadd.f32 0.0, %v778
        %v780 = vpop.f32.mrb[0].mxu0
        %781 = vmatprep.mubr.f32.mxu0 0.0
        %782 = vmatmul.mubr.f32.gmra.mrb[0].mxu0 %v420
        %v783 = vpop.f32.mrb[0].mxu0
        %v784 = vadd.f32 0.0, %v783
        %v785 = vpop.f32.mrb[0].mxu0
        %786 = vmatprep.mubr.f32.mxu0 0.0
        %787 = vmatmul.mubr.f32.gmra.mrb[0].mxu0 %v423
        %v788 = vpop.f32.mrb[0].mxu0
        %v789 = vadd.f32 0.0, %v788
        %v790 = vpop.f32.mrb[0].mxu0
        %791 = vmatprep.mubr.f32.mxu0 0.0
        %792 = vmatmul.mubr.f32.gmra.mrb[0].mxu0 %v426
        %v793 = vpop.f32.mrb[0].mxu0
        %v794 = vadd.f32 0.0, %v793
        %v795 = vpop.f32.mrb[0].mxu0
        %796 = vmatprep.mubr.f32.mxu0 0.0
        %797 = vmatmul.mubr.f32.gmra.mrb[0].mxu0 %v429
        %v798 = vpop.f32.mrb[0].mxu0
        %v799 = vadd.f32 0.0, %v798
        %v800 = vpop.f32.mrb[0].mxu0
        %801 = vmatprep.mubr.f32.mxu0 0.0
        %802 = vmatmul.mubr.f32.gmra.mrb[0].mxu0 %v432
        %v803 = vpop.f32.mrb[0].mxu0
        %v804 = vadd.f32 0.0, %v803
        %v805 = vpop.f32.mrb[0].mxu0
        %806 = vmatprep.mubr.f32.mxu0 0.0
        %807 = vmatmul.mubr.f32.gmra.mrb[0].mxu0 %v435
        %v808 = vpop.f32.mrb[0].mxu0
        %v809 = vadd.f32 0.0, %v808
        %v810 = vpop.f32.mrb[0].mxu0
        %811 = vmatprep.mubr.f32.mxu0 0.0
        %812 = vmatmul.mubr.f32.gmra.mrb[0].mxu0 %v438
        %v813 = vpop.f32.mrb[0].mxu0
        %v814 = vadd.f32 0.0, %v813
        %v815 = vpop.f32.mrb[0].mxu0
        %816 = vmatprep.mubr.f32.mxu0 0.0
        %817 = vmatmul.mubr.f32.gmra.mrb[0].mxu0 %v441
        %v818 = vpop.f32.mrb[0].mxu0
        %v819 = vadd.f32 0.0, %v818
        %v820 = vpop.f32.mrb[0].mxu0
        %821 = vmatprep.mubr.f32.mxu0 0.0
        %822 = vmatmul.mubr.f32.gmra.mrb[0].mxu0 %v444
        %v823 = vpop.f32.mrb[0].mxu0
        %v824 = vadd.f32 0.0, %v823
        %v825 = vpop.f32.mrb[0].mxu0
        %826 = vmatprep.mubr.f32.mxu0 0.0
        %827 = vmatmul.mubr.f32.gmra.mrb[0].mxu0 %v447
        %v828 = vpop.f32.mrb[0].mxu0
        %v829 = vadd.f32 0.0, %v828
        %v830 = vpop.f32.mrb[0].mxu0
        %831 = vmatprep.mubr.f32.mxu0 0.0
        %832 = vmatmul.mubr.f32.gmra.mrb[0].mxu0 %v450
        %v833 = vpop.f32.mrb[0].mxu0
        %v834 = vadd.f32 0.0, %v833
        %v835 = vpop.f32.mrb[0].mxu0
        %836 = vmatprep.mubr.f32.mxu0 0.0
        %837 = vmatmul.mubr.f32.gmra.mrb[0].mxu0 %v453
        %v838 = vpop.f32.mrb[0].mxu0
        %v839 = vadd.f32 0.0, %v838
        %v840 = vpop.f32.mrb[0].mxu0
        %841 = vmatprep.mubr.f32.mxu0 0.0
        %842 = vmatmul.mubr.f32.gmra.mrb[0].mxu0 %v456
        %v843 = vpop.f32.mrb[0].mxu0
        %v844 = vadd.f32 0.0, %v843
        %v845 = vpop.f32.mrb[0].mxu0
        %846 = vdwg.mxu0
        %v847 = vld [vmem:[%s2] sm:$0x1]
        %v849 = vlaneseq
        %v850 = vshrl.u32 %v849, 7
        %v851 = vsub.s32 0, %v850
        %v852 = vrot.slane %v847, %v851
        %v854 = vmul.f32 %v529, %v852
        %v855 = vmul.f32 %v534, %v852
        %v856 = vmul.f32 %v539, %v852
        %v857 = vmul.f32 %v544, %v852
        %v858 = vmul.f32 %v549, %v852
        %v859 = vmul.f32 %v554, %v852
        %v860 = vmul.f32 %v559, %v852
        %v861 = vmul.f32 %v564, %v852
        %v862 = vmul.f32 %v569, %v852
        %v863 = vmul.f32 %v574, %v852
        %v864 = vmul.f32 %v579, %v852
        %v865 = vmul.f32 %v584, %v852
        %v866 = vmul.f32 %v589, %v852
        %v867 = vmul.f32 %v594, %v852
        %v868 = vmul.f32 %v599, %v852
        %v869 = vmul.f32 %v604, %v852
        %v870 = vmul.f32 %v609, %v852
        %v871 = vmul.f32 %v614, %v852
        %v872 = vmul.f32 %v619, %v852
        %v873 = vmul.f32 %v624, %v852
        %v874 = vmul.f32 %v629, %v852
        %v875 = vmul.f32 %v634, %v852
        %v876 = vmul.f32 %v639, %v852
        %v877 = vmul.f32 %v644, %v852
        %v878 = vmul.f32 %v649, %v852
        %v879 = vmul.f32 %v654, %v852
        %v880 = vmul.f32 %v659, %v852
        %v881 = vmul.f32 %v664, %v852
        %v882 = vmul.f32 %v669, %v852
        %v883 = vmul.f32 %v674, %v852
        %v884 = vmul.f32 %v679, %v852
        %v885 = vmul.f32 %v684, %v852
        %v886 = vmul.f32 %v689, %v852
        %v887 = vmul.f32 %v694, %v852
        %v888 = vmul.f32 %v699, %v852
        %v889 = vmul.f32 %v704, %v852
        %v890 = vmul.f32 %v709, %v852
        %v891 = vmul.f32 %v714, %v852
        %v892 = vmul.f32 %v719, %v852
        %v893 = vmul.f32 %v724, %v852
        %v894 = vmul.f32 %v729, %v852
        %v895 = vmul.f32 %v734, %v852
        %v896 = vmul.f32 %v739, %v852
        %v897 = vmul.f32 %v744, %v852
        %v898 = vmul.f32 %v749, %v852
        %v899 = vmul.f32 %v754, %v852
        %v900 = vmul.f32 %v759, %v852
        %v901 = vmul.f32 %v764, %v852
        %v902 = vmul.f32 %v769, %v852
        %v903 = vmul.f32 %v774, %v852
        %v904 = vmul.f32 %v779, %v852
        %v905 = vmul.f32 %v784, %v852
        %v906 = vmul.f32 %v789, %v852
        %v907 = vmul.f32 %v794, %v852
        %v908 = vmul.f32 %v799, %v852
        %v909 = vmul.f32 %v804, %v852
        %v910 = vmul.f32 %v809, %v852
        %v911 = vmul.f32 %v814, %v852
        %v912 = vmul.f32 %v819, %v852
        %v913 = vmul.f32 %v824, %v852
        %v914 = vmul.f32 %v829, %v852
        %v915 = vmul.f32 %v834, %v852
        %v916 = vmul.f32 %v839, %v852
        %v917 = vmul.f32 %v844, %v852
        %v918 = vld [vmem:[%s3] sm:$0x1]
        %v920 = vlaneseq
        %v921 = vshrl.u32 %v920, 7
        %v922 = vsub.s32 0, %v921
        %v923 = vrot.slane %v918, %v922
        %v925 = vadd.f32 %v854, %v923
        %v926 = vadd.f32 %v855, %v923
        %v927 = vadd.f32 %v856, %v923
        %v928 = vadd.f32 %v857, %v923
        %v929 = vadd.f32 %v858, %v923
        %v930 = vadd.f32 %v859, %v923
        %v931 = vadd.f32 %v860, %v923
        %v932 = vadd.f32 %v861, %v923
        %v933 = vadd.f32 %v862, %v923
        %v934 = vadd.f32 %v863, %v923
        %v935 = vadd.f32 %v864, %v923
        %v936 = vadd.f32 %v865, %v923
        %v937 = vadd.f32 %v866, %v923
        %v938 = vadd.f32 %v867, %v923
        %v939 = vadd.f32 %v868, %v923
        %v940 = vadd.f32 %v869, %v923
        %v941 = vadd.f32 %v870, %v923
        %v942 = vadd.f32 %v871, %v923
        %v943 = vadd.f32 %v872, %v923
        %v944 = vadd.f32 %v873, %v923
        %v945 = vadd.f32 %v874, %v923
        %v946 = vadd.f32 %v875, %v923
        %v947 = vadd.f32 %v876, %v923
        %v948 = vadd.f32 %v877, %v923
        %v949 = vadd.f32 %v878, %v923
        %v950 = vadd.f32 %v879, %v923
        %v951 = vadd.f32 %v880, %v923
        %v952 = vadd.f32 %v881, %v923
        %v953 = vadd.f32 %v882, %v923
        %v954 = vadd.f32 %v883, %v923
        %v955 = vadd.f32 %v884, %v923
        %v956 = vadd.f32 %v885, %v923
        %v957 = vadd.f32 %v886, %v923
        %v958 = vadd.f32 %v887, %v923
        %v959 = vadd.f32 %v888, %v923
        %v960 = vadd.f32 %v889, %v923
        %v961 = vadd.f32 %v890, %v923
        %v962 = vadd.f32 %v891, %v923
        %v963 = vadd.f32 %v892, %v923
        %v964 = vadd.f32 %v893, %v923
        %v965 = vadd.f32 %v894, %v923
        %v966 = vadd.f32 %v895, %v923
        %v967 = vadd.f32 %v896, %v923
        %v968 = vadd.f32 %v897, %v923
        %v969 = vadd.f32 %v898, %v923
        %v970 = vadd.f32 %v899, %v923
        %v971 = vadd.f32 %v900, %v923
        %v972 = vadd.f32 %v901, %v923
        %v973 = vadd.f32 %v902, %v923
        %v974 = vadd.f32 %v903, %v923
        %v975 = vadd.f32 %v904, %v923
        %v976 = vadd.f32 %v905, %v923
        %v977 = vadd.f32 %v906, %v923
        %v978 = vadd.f32 %v907, %v923
        %v979 = vadd.f32 %v908, %v923
        %v980 = vadd.f32 %v909, %v923
        %v981 = vadd.f32 %v910, %v923
        %v982 = vadd.f32 %v911, %v923
        %v983 = vadd.f32 %v912, %v923
        %v984 = vadd.f32 %v913, %v923
        %v985 = vadd.f32 %v914, %v923
        %v986 = vadd.f32 %v915, %v923
        %v987 = vadd.f32 %v916, %v923
        %v988 = vadd.f32 %v917, %v923
        %v989 = vmax.f32 %v925, 0.0
        %v990 = vmax.f32 %v926, 0.0
        %v991 = vmax.f32 %v927, 0.0
        %v992 = vmax.f32 %v928, 0.0
        %v993 = vmax.f32 %v929, 0.0
        %v994 = vmax.f32 %v930, 0.0
        %v995 = vmax.f32 %v931, 0.0
        %v996 = vmax.f32 %v932, 0.0
        %v997 = vmax.f32 %v933, 0.0
        %v998 = vmax.f32 %v934, 0.0
        %v999 = vmax.f32 %v935, 0.0
        %v1000 = vmax.f32 %v936, 0.0
        %v1001 = vmax.f32 %v937, 0.0
        %v1002 = vmax.f32 %v938, 0.0
        %v1003 = vmax.f32 %v939, 0.0
        %v1004 = vmax.f32 %v940, 0.0
        %v1005 = vmax.f32 %v941, 0.0
        %v1006 = vmax.f32 %v942, 0.0
        %v1007 = vmax.f32 %v943, 0.0
        %v1008 = vmax.f32 %v944, 0.0
        %v1009 = vmax.f32 %v945, 0.0
        %v1010 = vmax.f32 %v946, 0.0
        %v1011 = vmax.f32 %v947, 0.0
        %v1012 = vmax.f32 %v948, 0.0
        %v1013 = vmax.f32 %v949, 0.0
        %v1014 = vmax.f32 %v950, 0.0
        %v1015 = vmax.f32 %v951, 0.0
        %v1016 = vmax.f32 %v952, 0.0
        %v1017 = vmax.f32 %v953, 0.0
        %v1018 = vmax.f32 %v954, 0.0
        %v1019 = vmax.f32 %v955, 0.0
        %v1020 = vmax.f32 %v956, 0.0
        %v1021 = vmax.f32 %v957, 0.0
        %v1022 = vmax.f32 %v958, 0.0
        %v1023 = vmax.f32 %v959, 0.0
        %v1024 = vmax.f32 %v960, 0.0
        %v1025 = vmax.f32 %v961, 0.0
        %v1026 = vmax.f32 %v962, 0.0
        %v1027 = vmax.f32 %v963, 0.0
        %v1028 = vmax.f32 %v964, 0.0
        %v1029 = vmax.f32 %v965, 0.0
        %v1030 = vmax.f32 %v966, 0.0
        %v1031 = vmax.f32 %v967, 0.0
        %v1032 = vmax.f32 %v968, 0.0
        %v1033 = vmax.f32 %v969, 0.0
        %v1034 = vmax.f32 %v970, 0.0
        %v1035 = vmax.f32 %v971, 0.0
        %v1036 = vmax.f32 %v972, 0.0
        %v1037 = vmax.f32 %v973, 0.0
        %v1038 = vmax.f32 %v974, 0.0
        %v1039 = vmax.f32 %v975, 0.0
        %v1040 = vmax.f32 %v976, 0.0
        %v1041 = vmax.f32 %v977, 0.0
        %v1042 = vmax.f32 %v978, 0.0
        %v1043 = vmax.f32 %v979, 0.0
        %v1044 = vmax.f32 %v980, 0.0
        %v1045 = vmax.f32 %v981, 0.0
        %v1046 = vmax.f32 %v982, 0.0
        %v1047 = vmax.f32 %v983, 0.0
        %v1048 = vmax.f32 %v984, 0.0
        %v1049 = vmax.f32 %v985, 0.0
        %v1050 = vmax.f32 %v986, 0.0
        %v1051 = vmax.f32 %v987, 0.0
        %v1052 = vmax.f32 %v988, 0.0
        %1053 = vst [vmem:[%s191] sm:$0xff] %v989
        %1054 = vst [vmem:[%s191 + $0x8] sm:$0xff] %v990
        %1055 = vst [vmem:[%s191 + $0x10] sm:$0xff] %v991
        %1056 = vst [vmem:[%s191 + $0x18] sm:$0xff] %v992
        %1057 = vst [vmem:[%s191 + $0x20] sm:$0xff] %v993
        %1058 = vst [vmem:[%s191 + $0x28] sm:$0xff] %v994
        %1059 = vst [vmem:[%s191 + $0x30] sm:$0xff] %v995
        %1060 = vst [vmem:[%s191 + $0x38] sm:$0xff] %v996
        %1061 = vst [vmem:[%s191 + $0x40] sm:$0xff] %v997
        %1062 = vst [vmem:[%s191 + $0x48] sm:$0xff] %v998
        %1063 = vst [vmem:[%s191 + $0x50] sm:$0xff] %v999
        %1064 = vst [vmem:[%s191 + $0x58] sm:$0xff] %v1000
        %1065 = vst [vmem:[%s191 + $0x60] sm:$0xff] %v1001
        %1066 = vst [vmem:[%s191 + $0x68] sm:$0xff] %v1002
        %1067 = vst [vmem:[%s191 + $0x70] sm:$0xff] %v1003
        %1068 = vst [vmem:[%s191 + $0x78] sm:$0xff] %v1004
        %1069 = vst [vmem:[%s191 + $0x80] sm:$0xff] %v1005
        %1070 = vst [vmem:[%s191 + $0x88] sm:$0xff] %v1006
        %1071 = vst [vmem:[%s191 + $0x90] sm:$0xff] %v1007
        %1072 = vst [vmem:[%s191 + $0x98] sm:$0xff] %v1008
        %1073 = vst [vmem:[%s191 + $0xa0] sm:$0xff] %v1009
        %1074 = vst [vmem:[%s191 + $0xa8] sm:$0xff] %v1010
        %1075 = vst [vmem:[%s191 + $0xb0] sm:$0xff] %v1011
        %1076 = vst [vmem:[%s191 + $0xb8] sm:$0xff] %v1012
        %1077 = vst [vmem:[%s191 + $0xc0] sm:$0xff] %v1013
        %1078 = vst [vmem:[%s191 + $0xc8] sm:$0xff] %v1014
        %1079 = vst [vmem:[%s191 + $0xd0] sm:$0xff] %v1015
        %1080 = vst [vmem:[%s191 + $0xd8] sm:$0xff] %v1016
        %1081 = vst [vmem:[%s191 + $0xe0] sm:$0xff] %v1017
        %1082 = vst [vmem:[%s191 + $0xe8] sm:$0xff] %v1018
        %1083 = vst [vmem:[%s191 + $0xf0] sm:$0xff] %v1019
        %1084 = vst [vmem:[%s191 + $0xf8] sm:$0xff] %v1020
        %1085 = vst [vmem:[%s191 + $0x100] sm:$0xff] %v1021
        %1086 = vst [vmem:[%s191 + $0x108] sm:$0xff] %v1022
        %1087 = vst [vmem:[%s191 + $0x110] sm:$0xff] %v1023
        %1088 = vst [vmem:[%s191 + $0x118] sm:$0xff] %v1024
        %1089 = vst [vmem:[%s191 + $0x120] sm:$0xff] %v1025
        %1090 = vst [vmem:[%s191 + $0x128] sm:$0xff] %v1026
        %1091 = vst [vmem:[%s191 + $0x130] sm:$0xff] %v1027
        %1092 = vst [vmem:[%s191 + $0x138] sm:$0xff] %v1028
        %1093 = vst [vmem:[%s191 + $0x140] sm:$0xff] %v1029
        %1094 = vst [vmem:[%s191 + $0x148] sm:$0xff] %v1030
        %1095 = vst [vmem:[%s191 + $0x150] sm:$0xff] %v1031
        %1096 = vst [vmem:[%s191 + $0x158] sm:$0xff] %v1032
        %1097 = vst [vmem:[%s191 + $0x160] sm:$0xff] %v1033
        %1098 = vst [vmem:[%s191 + $0x168] sm:$0xff] %v1034
        %1099 = vst [vmem:[%s191 + $0x170] sm:$0xff] %v1035
        %1100 = vst [vmem:[%s191 + $0x178] sm:$0xff] %v1036
        %1101 = vst [vmem:[%s191 + $0x180] sm:$0xff] %v1037
        %1102 = vst [vmem:[%s191 + $0x188] sm:$0xff] %v1038
        %1103 = vst [vmem:[%s191 + $0x190] sm:$0xff] %v1039
        %1104 = vst [vmem:[%s191 + $0x198] sm:$0xff] %v1040
        %1105 = vst [vmem:[%s191 + $0x1a0] sm:$0xff] %v1041
        %1106 = vst [vmem:[%s191 + $0x1a8] sm:$0xff] %v1042
        %1107 = vst [vmem:[%s191 + $0x1b0] sm:$0xff] %v1043
        %1108 = vst [vmem:[%s191 + $0x1b8] sm:$0xff] %v1044
        %1109 = vst [vmem:[%s191 + $0x1c0] sm:$0xff] %v1045
        %1110 = vst [vmem:[%s191 + $0x1c8] sm:$0xff] %v1046
        %1111 = vst [vmem:[%s191 + $0x1d0] sm:$0xff] %v1047
        %1112 = vst [vmem:[%s191 + $0x1d8] sm:$0xff] %v1048
        %1113 = vst [vmem:[%s191 + $0x1e0] sm:$0xff] %v1049
        %1114 = vst [vmem:[%s191 + $0x1e8] sm:$0xff] %v1050
        %1115 = vst [vmem:[%s191 + $0x1f0] sm:$0xff] %v1051
        %1116 = vst [vmem:[%s191 + $0x1f8] sm:$0xff] %v1052
        %s1117 = sand.u32 %s115, 1
        %s1118 = scalar_lea.sflag [#allocation3], %s1117
        %s1119 = sand.u32 %s115, 1
        %s1120 = smul.addr %s1119, 512
        %s1121 = scalar_lea.vmem [#allocation2], %s1120
        // Predicated region
        $region37: #{tpu_custom_call.1} parent=35 // pred_check
          %p1122 = pneg %p125
        $region38: #{tpu_custom_call.1} parent=35 // pred_check_branch
          %1124 = sbr.rel (%p1122) target = $region40
        $region39: #{tpu_custom_call.1} parent=35 // pred_region
          %s1125 = smul.u32 64, %s18
          %s1127 = ssub.s32 8192, 8192
          %1128 = vsyncadd %s1118, %s1127
          %s1129 = smul.addr %s1125, 128
          %s1130 = scalar_lea.hbm %s4, %s1129
          %s1131 = sshll.u32 %s1121, 4
          %s1132 = int_to_ptr.vmem [resolvable:$true] %s1131
          %1137 = dma.vmem_to_hbm [thread:$0]  %s1132, 8192, %s1130, %s1118, 128, 128, 8
        $region40: #{tpu_custom_call.1} parent=35 // pred_fallthru
          _
      $region36: #{tpu_custom_call.1} parent=5 // pred_fallthru
        _
      %p1138 = scmp.le.s32.totalorder 2, %s13
      // Predicated region
      $region41: #{tpu_custom_call.1} parent=5 // pred_check
        %p1139 = pneg %p1138
      $region42: #{tpu_custom_call.1} parent=5 // pred_check_branch
        %1141 = sbr.rel (%p1139) target = $region44
      $region43: #{tpu_custom_call.1} parent=5 // pred_region
        %s1142 = ssub.s32 %s13, 2
        // Predicated region
        $region45: #{tpu_custom_call.1} parent=43 // pred_check
          %p1143 = pneg %p131
        $region46: #{tpu_custom_call.1} parent=43 // pred_check_branch
          %1145 = sbr.rel (%p1143) target = $region48
        $region47: #{tpu_custom_call.1} parent=43 // pred_region
          %s1146 = sand.u32 %s116, 1
          %s1147 = scalar_lea.sflag [#allocation3], %s1146
          %s1148 = sand.u32 %s116, 1
          %s1149 = smul.addr %s1148, 512
          %s1150 = scalar_lea.vmem [#allocation2], %s1149
          %1151 = dma.done %s1147, 8192
        $region48: #{tpu_custom_call.1} parent=43 // pred_fallthru
          _
      $region44: #{tpu_custom_call.1} parent=5 // pred_fallthru
        _
    $region6: #{tpu_custom_call.1} parent=1 // loop_footer
      %s17 = sadd.s32 1, %s13
    $region7: #{tpu_custom_call.1} parent=1 // loop_footer_branch
      %12 = sbr.rel target = $region3
    $region8: #{tpu_custom_call.1} parent=1 // loop_exit
      _
    %1152 = vsyncpa [#allocation3], 1
    %s1153 = scalar_lea.sflag [#allocation3], 1
    %1154 = vsyncpa %s1153, 1

</llo_original>
